<compile_context>
chip_gen: v5e
topology: v5e:2x2
jax: 0.10.0
libtpu: 0.0.40
codegen_flags: <defaults>
</compile_context>

<pallas_src>
import jax
import jax.numpy as jnp
from jax import lax
from jax.experimental import pallas as pl
from jax.experimental.pallas import tpu as pltpu

NUM_CLASSES = 2
OUT_PAD = 128   # lane-dense output block: cols 0..1 prob, cols 2..3 logprob, rest 0


def _round_up(x, m):
    return ((x + m - 1) // m) * m


# --------------------------------------------------------------------------
# Fused kernel: last-token row gather (manual DMA) + classification head
# --------------------------------------------------------------------------
def _make_fused_head_kernel(tb, H):
    def kernel(rows_ref,                        # SMEM scalar prefetch (2*B_pad,) i32
               feats_hbm,                       # pl.ANY: (N_rows, H) f32 slab in HBM
               w1_ref, b1_ref, w2_ref, b2_ref,  # resident VMEM weights
               out_ref,                         # (tb, OUT_PAD) f32
               x_vmem, sem):                    # scratch: (tb, 2H) f32, DMA sem (1,)
        t = pl.program_id(0)
        base = t * (2 * tb)

        # ---- fused last-token gather ------------------------------------
        # One DMA per gathered row; all copies are the same (1, H) f32 size and
        # share one DMA semaphore, so 2*tb starts followed by 2*tb equal-size
        # waits guarantee completion.  Example i's two snippets land in the
        # [0:H] and [H:2H] lane halves of row i (no in-kernel reshape needed).
        def issue(i, carry):
            r0 = rows_ref[base + 2 * i]
            r1 = rows_ref[base + 2 * i + 1]
            pltpu.make_async_copy(
                feats_hbm.at[pl.ds(r0, 1), :],
                x_vmem.at[pl.ds(i, 1), pl.ds(0, H)], sem.at[0]).start()
            pltpu.make_async_copy(
                feats_hbm.at[pl.ds(r1, 1), :],
                x_vmem.at[pl.ds(i, 1), pl.ds(H, H)], sem.at[0]).start()
            return carry
        lax.fori_loop(0, tb, issue, 0)

        def drain(r, carry):
            pltpu.make_async_copy(
                feats_hbm.at[pl.ds(0, 1), :],
                x_vmem.at[pl.ds(0, 1), pl.ds(0, H)], sem.at[0]).wait()
            return carry
        lax.fori_loop(0, 2 * tb, drain, 0)
        # TODO(synk): for multi-tile grids, double-buffer x_vmem and issue the
        # next tile's gather before the matmul to overlap DMA with compute.

        # ---- classification head (dropout = eval identity) ---------------
        x = x_vmem[...].astype(jnp.bfloat16)                    # (tb, 2H) MXU operand
        h = jnp.tanh(
            jnp.dot(x, w1_ref[...], preferred_element_type=jnp.float32)
            + b1_ref[...])
        logits = (jnp.dot(h.astype(jnp.bfloat16), w2_ref[...],
                          preferred_element_type=jnp.float32) + b2_ref[...])
        cls = jax.lax.broadcasted_iota(jnp.int32, logits.shape, 1)
        logits = jnp.where(cls < NUM_CLASSES, logits, -1e30)    # mask padded classes

        # softmax + exact log-softmax in f32 (approx reciprocal only for prob)
        m = jnp.max(logits, axis=-1, keepdims=True)
        e = jnp.exp(logits - m)
        s = jnp.sum(e, axis=-1, keepdims=True)
        prob = e * pl.reciprocal(s, approx=True)
        logprob = (logits - m) - jnp.log(s)
        lp0 = jnp.sum(jnp.where(cls == 0, logprob, 0.0), axis=-1, keepdims=True)
        lp1 = jnp.sum(jnp.where(cls == 1, logprob, 0.0), axis=-1, keepdims=True)

        # single unmasked lane-dense store: [prob0, prob1, logp0, logp1, 0...]
        out = jnp.where(cls < NUM_CLASSES, prob,
              jnp.where(cls == NUM_CLASSES, lp0,
              jnp.where(cls == NUM_CLASSES + 1, lp1, 0.0)))
        out_ref[...] = out

    return kernel


def classification_head_with_loss(feats_flat, rows, w1, b1, w2, b2, labels, *,
                                  tb=128):
    """feats_flat: (N, H) f32 HBM slab; rows: (2B,) i32 last-token row ids;
    labels: (B,) -> (mean CE loss, prob (B, 2))."""
    _, H = feats_flat.shape
    M = rows.shape[0]
    B = M // 2
    # Whole (8-rounded) batch in a single grid step for small B; 128-row tiles
    # otherwise.  On v6e/v7x with very large B, pass tb=256 to fill the
    # 256-wide MXU.
    tb = int(min(tb, _round_up(B, 8)))
    n_tiles = int(pl.cdiv(B, tb))
    B_pad = n_tiles * tb

    # padded row ids gather row 0 (in-bounds, finite); their outputs are sliced off
    rows_pad = jnp.pad(rows.astype(jnp.int32), (0, 2 * B_pad - M))

    # bf16 MXU operands; class dim padded to a full 128-lane width
    w1b = w1.astype(jnp.bfloat16)
    b1f = b1.reshape(1, -1).astype(jnp.float32)
    w2p = jnp.zeros((H, OUT_PAD), jnp.bfloat16).at[:, :NUM_CLASSES].set(
        w2.astype(jnp.bfloat16))
    b2p = jnp.zeros((1, OUT_PAD), jnp.float32).at[0, :NUM_CLASSES].set(
        b2.astype(jnp.float32))

    # VMEM budget: single-buffer gather scratch + double-buffered out tile +
    # resident weights (counted x2: constant-index specs still get 2 buffers).
    vmem_bytes = (tb * 2 * H * 4
                  + 2 * (tb * OUT_PAD * 4)
                  + 2 * (2 * H * H * 2 + H * 4 + H * OUT_PAD * 2 + OUT_PAD * 4))
    vmem_limit = int(max(vmem_bytes + (2 << 20), 16 << 20))

    flops = 2 * B_pad * (2 * H) * H + 2 * B_pad * H * OUT_PAD
    transcendentals = B_pad * (H + OUT_PAD + 2)
    bytes_accessed = (2 * B_pad * H * 4 + 2 * B_pad * 4
                      + 2 * H * H * 2 + H * 4 + H * OUT_PAD * 2 + OUT_PAD * 4
                      + B_pad * OUT_PAD * 4)

    kernel = _make_fused_head_kernel(tb, H)
    out_pad = pl.pallas_call(
        kernel,
        out_shape=jax.ShapeDtypeStruct((B_pad, OUT_PAD), jnp.float32),
        grid_spec=pltpu.PrefetchScalarGridSpec(
            num_scalar_prefetch=1,
            grid=(n_tiles,),
            in_specs=[
                pl.BlockSpec(memory_space=pl.ANY),                      # feature slab
                pl.BlockSpec((2 * H, H), lambda i, _r: (0, 0)),         # w1 resident
                pl.BlockSpec((1, H), lambda i, _r: (0, 0)),             # b1 resident
                pl.BlockSpec((H, OUT_PAD), lambda i, _r: (0, 0)),       # w2 resident
                pl.BlockSpec((1, OUT_PAD), lambda i, _r: (0, 0)),       # b2 resident
            ],
            out_specs=pl.BlockSpec((tb, OUT_PAD), lambda i, _r: (i, 0)),
            scratch_shapes=[pltpu.VMEM((tb, 2 * H), jnp.float32),
                            pltpu.SemaphoreType.DMA((1,))],
        ),
        compiler_params=pltpu.CompilerParams(
            # split across the 2 v7x TCs only when there are >= 2 MXU-sized tiles
            dimension_semantics=(("parallel",) if n_tiles > 1 else ("arbitrary",)),
            vmem_limit_bytes=vmem_limit),
        cost_estimate=pl.CostEstimate(
            flops=int(flops),
            transcendentals=int(transcendentals),
            bytes_accessed=int(bytes_accessed)),
    )(rows_pad, feats_flat, w1b, b1f, w2p, b2p)

    prob = out_pad[:B, :NUM_CLASSES]
    # CrossEntropyLoss: select the exact in-kernel log-softmax column per label.
    # Labels never enter the kernel (no masked label DMA); this is a (B,)-sized
    # fused XLA epilogue.
    logprob = out_pad[:B, NUM_CLASSES:NUM_CLASSES + NUM_CLASSES]       # (B, 2)
    labels = labels.astype(jnp.int32)
    nll = -jnp.where(labels == 0, logprob[:, 0], logprob[:, 1])
    loss = jnp.mean(nll)
    return loss, prob


# --------------------------------------------------------------------------
# Model.forward
# --------------------------------------------------------------------------
def model_forward(params, input_ids, prev_tokens_ids, lengths, labels, block_size):
    assert lengths.shape[-1] % 2 == 0
    input_ids = input_ids.reshape(-1, block_size)               # (2B, block_size)
    # TODO(synk): prev_tokens_ids feeds the PLBART decoder in the original
    # model; unused by the features_only stand-in encoder here.
    prev_tokens_ids = prev_tokens_ids.reshape(-1, block_size)
    lengths = lengths.reshape(-1, lengths.shape[-1] // 2) - 1
    lengths = jnp.squeeze(lengths, axis=-1).astype(jnp.int32)   # (2B,)

    # encoder stand-in (features_only): embedding lookup -> (2B, block_size, H)
    feats = params["embed"][input_ids]
    n2, _, H = feats.shape

    # last-token row index into the flat (2B*block_size, H) slab (gathered in-kernel)
    rows = jnp.arange(n2, dtype=jnp.int32) * block_size + lengths

    return classification_head_with_loss(
        feats.reshape(n2 * block_size, H), rows,
        params["w1"], params["b1"], params["w2"], params["b2"], labels)


def reference_forward(params, input_ids, prev_tokens_ids, lengths, labels,
                      block_size):
    """Pure-JAX f32 reference for correctness checking."""
    ii = input_ids.reshape(-1, block_size)
    ln = jnp.squeeze(lengths.reshape(-1, lengths.shape[-1] // 2) - 1, axis=-1)
    feats = params["embed"][ii]
    out = feats[jnp.arange(ii.shape[0]), ln, :]
    x = out.reshape(-1, out.shape[-1] * 2)
    h = jnp.tanh(x @ params["w1"] + params["b1"])
    logits = h @ params["w2"] + params["b2"]
    prob = jax.nn.softmax(logits, axis=-1)
    logp = jax.nn.log_softmax(logits, axis=-1)
    loss = -jnp.mean(logp[jnp.arange(labels.shape[0]), labels])
    return loss, prob


def init_params(key, vocab_size, hidden):
    k0, k1, k2, k3, k4 = jax.random.split(key, 5)
    return {
        "embed": jax.random.normal(k0, (vocab_size, hidden), jnp.float32) * 0.02,
        "w1": jax.random.normal(k1, (2 * hidden, hidden), jnp.float32) * 0.02,
        "b1": jax.random.normal(k2, (hidden,), jnp.float32) * 0.02,
        "w2": jax.random.normal(k3, (hidden, 2), jnp.float32) * 0.02,
        "b2": jax.random.normal(k4, (2,), jnp.float32) * 0.02,
    }


if __name__ == "__main__":
    key = jax.random.PRNGKey(0)
    B_pairs = 20        # each example is a pair of code snippets
    block_size = 8
    hidden = 128        # lane-aligned hidden size for the gather DMA halves
    vocab = 50

    kp, ki, kj, kl, ky = jax.random.split(key, 5)
    params = init_params(kp, vocab, hidden)

    input_ids = jax.random.randint(ki, (B_pairs, 2 * block_size), 0, vocab, jnp.int32)
    prev_tokens_ids = jax.random.randint(kj, (B_pairs, 2 * block_size), 0, vocab, jnp.int32)
    # lengths per (example, half) in [1, block_size]; forward subtracts 1
    lengths = jax.random.randint(kl, (B_pairs, 2), 1, block_size + 1, jnp.int32)
    labels = jax.random.randint(ky, (B_pairs,), 0, 2, jnp.int32)

    loss, prob = model_forward(params, input_ids, prev_tokens_ids, lengths,
                               labels, block_size)
    jax.block_until_ready((loss, prob))

    # sanity checks
    assert prob.shape == (B_pairs, 2)
    assert jnp.allclose(jnp.sum(prob, axis=-1), 1.0, atol=1e-2)
    assert jnp.isfinite(loss)

    ref_loss, ref_prob = reference_forward(params, input_ids, prev_tokens_ids,
                                           lengths, labels, block_size)
    assert jnp.allclose(prob, ref_prob, atol=1e-2)
    assert jnp.allclose(loss, ref_loss, atol=1e-2)

    print("KERNEL_OK")
</pallas_src>

<mosaic_0001>
module attributes {stable_mosaic.version = 11 : i64} {
  func.func @kernel(%arg0: i32, %arg1: memref<48xi32, #tpu.memory_space<smem>>, %arg2: memref<320x128xf32, #tpu.memory_space<any>>, %arg3: memref<256x128xbf16, #tpu.memory_space<vmem>>, %arg4: memref<1x128xf32, #tpu.memory_space<vmem>>, %arg5: memref<128x128xbf16, #tpu.memory_space<vmem>>, %arg6: memref<1x128xf32, #tpu.memory_space<vmem>>, %arg7: memref<24x128xf32, #tpu.memory_space<vmem>>, %arg8: memref<24x256xf32, #tpu.memory_space<vmem>>, %arg9: memref<1x!tpu.dma_semaphore, #tpu.memory_space<semaphore_mem>>) attributes {dimension_semantics = [#tpu.dimension_semantics<arbitrary>], iteration_bounds = array<i64: 1>, scalar_prefetch = 1 : i64, scratch_operands = 2 : i64, tpu.core_type = #tpu.core_type<tc>, window_params = [{}, {pipeline_mode = #tpu.pipeline_mode<synchronous>, transform_indices = @transform_1, window_bounds = array<i64: 256, 128>}, {pipeline_mode = #tpu.pipeline_mode<synchronous>, transform_indices = @transform_2, window_bounds = array<i64: 1, 128>}, {pipeline_mode = #tpu.pipeline_mode<synchronous>, transform_indices = @transform_3, window_bounds = array<i64: 128, 128>}, {pipeline_mode = #tpu.pipeline_mode<synchronous>, transform_indices = @transform_4, window_bounds = array<i64: 1, 128>}, {transform_indices = @transform_5, window_bounds = array<i64: 24, 128>}]} {
    %c48_i32 = arith.constant 48 : i32
    %0 = arith.muli %arg0, %c48_i32 : i32
    %c0_i32 = arith.constant 0 : i32
    %c24_i32 = arith.constant 24 : i32
    %1 = arith.addi %c0_i32, %c24_i32 : i32
    %c1_i32 = arith.constant 1 : i32
    scf.for %arg10 = %c0_i32 to %1 step %c1_i32  : i32 {
      %c2_i32_28 = arith.constant 2 : i32
      %64 = arith.muli %c2_i32_28, %arg10 : i32
      %65 = arith.addi %0, %64 : i32
      %66 = arith.index_cast %65 : i32 to index
      %67 = memref.load %arg1[%66] : memref<48xi32, #tpu.memory_space<smem>>
      %c2_i32_29 = arith.constant 2 : i32
      %68 = arith.muli %c2_i32_29, %arg10 : i32
      %69 = arith.addi %0, %68 : i32
      %c1_i32_30 = arith.constant 1 : i32
      %70 = arith.addi %69, %c1_i32_30 : i32
      %71 = arith.index_cast %70 : i32 to index
      %72 = memref.load %arg1[%71] : memref<48xi32, #tpu.memory_space<smem>>
      %c0_i32_31 = arith.constant 0 : i32
      %c0_i32_32 = arith.constant 0 : i32
      %73 = tpu.memref_slice %arg2[%67, %c0_i32_32] : memref<320x128xf32, #tpu.memory_space<any>> -> memref<1x128xf32, #tpu.memory_space<any>>
      %c0_i32_33 = arith.constant 0 : i32
      %74 = tpu.memref_slice %arg8[%arg10, %c0_i32_33] : memref<24x256xf32, #tpu.memory_space<vmem>> -> memref<1x128xf32, #tpu.memory_space<vmem>>
      %75 = tpu.memref_slice %arg9[%c0_i32_31] : memref<1x!tpu.dma_semaphore, #tpu.memory_space<semaphore_mem>> -> memref<1x!tpu.dma_semaphore, #tpu.memory_space<semaphore_mem>>
      %76 = tpu.memref_squeeze %75 : memref<1x!tpu.dma_semaphore, #tpu.memory_space<semaphore_mem>> -> memref<!tpu.dma_semaphore, #tpu.memory_space<semaphore_mem>>
      tpu.enqueue_dma source(%73 : memref<1x128xf32, #tpu.memory_space<any>>) target(%74 : memref<1x128xf32, #tpu.memory_space<vmem>>) target_semaphore(%76 : memref<!tpu.dma_semaphore, #tpu.memory_space<semaphore_mem>>)
      %c0_i32_34 = arith.constant 0 : i32
      %c0_i32_35 = arith.constant 0 : i32
      %77 = tpu.memref_slice %arg2[%72, %c0_i32_35] : memref<320x128xf32, #tpu.memory_space<any>> -> memref<1x128xf32, #tpu.memory_space<any>>
      %c128_i32 = arith.constant 128 : i32
      %78 = tpu.memref_slice %arg8[%arg10, %c128_i32] : memref<24x256xf32, #tpu.memory_space<vmem>> -> memref<1x128xf32, #tpu.memory_space<vmem>>
      %79 = tpu.memref_slice %arg9[%c0_i32_34] : memref<1x!tpu.dma_semaphore, #tpu.memory_space<semaphore_mem>> -> memref<1x!tpu.dma_semaphore, #tpu.memory_space<semaphore_mem>>
      %80 = tpu.memref_squeeze %79 : memref<1x!tpu.dma_semaphore, #tpu.memory_space<semaphore_mem>> -> memref<!tpu.dma_semaphore, #tpu.memory_space<semaphore_mem>>
      tpu.enqueue_dma source(%77 : memref<1x128xf32, #tpu.memory_space<any>>) target(%78 : memref<1x128xf32, #tpu.memory_space<vmem>>) target_semaphore(%80 : memref<!tpu.dma_semaphore, #tpu.memory_space<semaphore_mem>>)
    }
    %c24_i32_0 = arith.constant 24 : i32
    %c0_i32_1 = arith.constant 0 : i32
    %c48_i32_2 = arith.constant 48 : i32
    %2 = arith.addi %c0_i32_1, %c48_i32_2 : i32
    %c1_i32_3 = arith.constant 1 : i32
    scf.for %arg10 = %c0_i32_1 to %2 step %c1_i32_3  : i32 {
      %c0_i32_28 = arith.constant 0 : i32
      %c0_i32_29 = arith.constant 0 : i32
      %c0_i32_30 = arith.constant 0 : i32
      %64 = tpu.memref_slice %arg2[%c0_i32_29, %c0_i32_30] : memref<320x128xf32, #tpu.memory_space<any>> -> memref<1x128xf32, #tpu.memory_space<any>>
      %c0_i32_31 = arith.constant 0 : i32
      %c0_i32_32 = arith.constant 0 : i32
      %65 = tpu.memref_slice %arg8[%c0_i32_31, %c0_i32_32] : memref<24x256xf32, #tpu.memory_space<vmem>> -> memref<1x128xf32, #tpu.memory_space<vmem>>
      %66 = tpu.memref_slice %arg9[%c0_i32_28] : memref<1x!tpu.dma_semaphore, #tpu.memory_space<semaphore_mem>> -> memref<1x!tpu.dma_semaphore, #tpu.memory_space<semaphore_mem>>
      %67 = tpu.memref_squeeze %66 : memref<1x!tpu.dma_semaphore, #tpu.memory_space<semaphore_mem>> -> memref<!tpu.dma_semaphore, #tpu.memory_space<semaphore_mem>>
      tpu.wait_dma2 semaphore(%67 : memref<!tpu.dma_semaphore, #tpu.memory_space<semaphore_mem>>) src(%64 : memref<1x128xf32, #tpu.memory_space<any>>) dst(%65 : memref<1x128xf32, #tpu.memory_space<vmem>>)
    }
    %c0 = arith.constant 0 : index
    %c0_4 = arith.constant 0 : index
    %3 = vector.load %arg8[%c0, %c0_4] : memref<24x256xf32, #tpu.memory_space<vmem>>, vector<24x256xf32>
    %4 = arith.truncf %3 : vector<24x256xf32> to vector<24x256xbf16>
    %c0_5 = arith.constant 0 : index
    %c0_6 = arith.constant 0 : index
    %5 = vector.load %arg3[%c0_5, %c0_6] : memref<256x128xbf16, #tpu.memory_space<vmem>>, vector<256x128xbf16>
    %cst = arith.constant dense<0.000000e+00> : vector<24x128xf32>
    %6 = tpu.matmul %4, %5, %cst {dimension_numbers = #tpu.dot_dimension_numbers<[1], [0], [0], [1], [0, 0, 1, 1], [], []>} : vector<24x256xbf16>, vector<256x128xbf16>, vector<24x128xf32> -> vector<24x128xf32>
    %c0_7 = arith.constant 0 : index
    %c0_8 = arith.constant 0 : index
    %7 = vector.load %arg4[%c0_7, %c0_8] : memref<1x128xf32, #tpu.memory_space<vmem>>, vector<1x128xf32>
    %8 = vector.broadcast %7 : vector<1x128xf32> to vector<24x128xf32>
    %9 = arith.addf %6, %8 : vector<24x128xf32>
    %10 = math.tanh %9 : vector<24x128xf32>
    %11 = arith.truncf %10 : vector<24x128xf32> to vector<24x128xbf16>
    %c0_9 = arith.constant 0 : index
    %c0_10 = arith.constant 0 : index
    %12 = vector.load %arg5[%c0_9, %c0_10] : memref<128x128xbf16, #tpu.memory_space<vmem>>, vector<128x128xbf16>
    %cst_11 = arith.constant dense<0.000000e+00> : vector<24x128xf32>
    %13 = tpu.matmul %11, %12, %cst_11 {dimension_numbers = #tpu.dot_dimension_numbers<[1], [0], [0], [1], [0, 0, 1, 1], [], []>} : vector<24x128xbf16>, vector<128x128xbf16>, vector<24x128xf32> -> vector<24x128xf32>
    %c0_12 = arith.constant 0 : index
    %c0_13 = arith.constant 0 : index
    %14 = vector.load %arg6[%c0_12, %c0_13] : memref<1x128xf32, #tpu.memory_space<vmem>>, vector<1x128xf32>
    %15 = vector.broadcast %14 : vector<1x128xf32> to vector<24x128xf32>
    %16 = arith.addf %13, %15 : vector<24x128xf32>
    %17 = tpu.iota {dimensions = array<i32: 1>} : vector<24x128xi32>
    %c2_i32 = arith.constant 2 : i32
    %18 = vector.broadcast %c2_i32 : i32 to vector<24x128xi32>
    %19 = arith.cmpi slt, %17, %18 : vector<24x128xi32>
    %cst_14 = arith.constant -1.000000e+30 : f32
    %20 = vector.broadcast %cst_14 : f32 to vector<24x128xf32>
    %21 = arith.select %19, %16, %20 : vector<24x128xi1>, vector<24x128xf32>
    %cst_15 = arith.constant dense<0xFF800000> : vector<24xf32>
    %22 = vector.multi_reduction <maximumf>, %21, %cst_15 [1] : vector<24x128xf32> to vector<24xf32>
    %23 = vector.shape_cast %22 : vector<24xf32> to vector<24x1xf32>
    %24 = vector.broadcast %23 : vector<24x1xf32> to vector<24x128xf32>
    %25 = arith.subf %21, %24 : vector<24x128xf32>
    %26 = math.exp %25 : vector<24x128xf32>
    %cst_16 = arith.constant dense<0.000000e+00> : vector<24xf32>
    %27 = vector.multi_reduction <add>, %26, %cst_16 [1] : vector<24x128xf32> to vector<24xf32>
    %28 = vector.shape_cast %27 : vector<24xf32> to vector<24x1xf32>
    %29 = tpu.reciprocal %28 {approx = true} : vector<24x1xf32> -> vector<24x1xf32>
    %30 = vector.broadcast %29 : vector<24x1xf32> to vector<24x128xf32>
    %31 = arith.mulf %26, %30 : vector<24x128xf32>
    %32 = vector.broadcast %23 : vector<24x1xf32> to vector<24x128xf32>
    %33 = arith.subf %21, %32 : vector<24x128xf32>
    %34 = math.log %28 : vector<24x1xf32>
    %35 = vector.broadcast %34 : vector<24x1xf32> to vector<24x128xf32>
    %36 = arith.subf %33, %35 : vector<24x128xf32>
    %c0_i32_17 = arith.constant 0 : i32
    %37 = vector.broadcast %c0_i32_17 : i32 to vector<24x128xi32>
    %38 = arith.cmpi eq, %17, %37 : vector<24x128xi32>
    %cst_18 = arith.constant 0.000000e+00 : f32
    %39 = vector.broadcast %cst_18 : f32 to vector<24x128xf32>
    %40 = arith.select %38, %36, %39 : vector<24x128xi1>, vector<24x128xf32>
    %cst_19 = arith.constant dense<0.000000e+00> : vector<24xf32>
    %41 = vector.multi_reduction <add>, %40, %cst_19 [1] : vector<24x128xf32> to vector<24xf32>
    %42 = vector.shape_cast %41 : vector<24xf32> to vector<24x1xf32>
    %c1_i32_20 = arith.constant 1 : i32
    %43 = vector.broadcast %c1_i32_20 : i32 to vector<24x128xi32>
    %44 = arith.cmpi eq, %17, %43 : vector<24x128xi32>
    %cst_21 = arith.constant 0.000000e+00 : f32
    %45 = vector.broadcast %cst_21 : f32 to vector<24x128xf32>
    %46 = arith.select %44, %36, %45 : vector<24x128xi1>, vector<24x128xf32>
    %cst_22 = arith.constant dense<0.000000e+00> : vector<24xf32>
    %47 = vector.multi_reduction <add>, %46, %cst_22 [1] : vector<24x128xf32> to vector<24xf32>
    %48 = vector.shape_cast %47 : vector<24xf32> to vector<24x1xf32>
    %c2_i32_23 = arith.constant 2 : i32
    %49 = vector.broadcast %c2_i32_23 : i32 to vector<24x128xi32>
    %50 = arith.cmpi slt, %17, %49 : vector<24x128xi32>
    %c2_i32_24 = arith.constant 2 : i32
    %51 = vector.broadcast %c2_i32_24 : i32 to vector<24x128xi32>
    %52 = arith.cmpi eq, %17, %51 : vector<24x128xi32>
    %c3_i32 = arith.constant 3 : i32
    %53 = vector.broadcast %c3_i32 : i32 to vector<24x128xi32>
    %54 = arith.cmpi eq, %17, %53 : vector<24x128xi32>
    %cst_25 = arith.constant 0.000000e+00 : f32
    %55 = vector.shape_cast %48 : vector<24x1xf32> to vector<24x1xf32>
    %56 = vector.broadcast %55 : vector<24x1xf32> to vector<24x128xf32>
    %57 = vector.broadcast %cst_25 : f32 to vector<24x128xf32>
    %58 = arith.select %54, %56, %57 : vector<24x128xi1>, vector<24x128xf32>
    %59 = vector.shape_cast %42 : vector<24x1xf32> to vector<24x1xf32>
    %60 = vector.broadcast %59 : vector<24x1xf32> to vector<24x128xf32>
    %61 = arith.select %52, %60, %58 : vector<24x128xi1>, vector<24x128xf32>
    %62 = arith.select %50, %31, %61 : vector<24x128xi1>, vector<24x128xf32>
    %c0_26 = arith.constant 0 : index
    %c0_27 = arith.constant 0 : index
    %63 = vector.load %arg7[%c0_26, %c0_27] : memref<24x128xf32, #tpu.memory_space<vmem>>, vector<24x128xf32>
    tpu.vector_store %arg7[%c0_26, %c0_27], %62 {strides = array<i32>} : memref<24x128xf32, #tpu.memory_space<vmem>>, vector<24x128xf32>,
    return
  }
  func.func @transform_1(%arg0: i32, %arg1: memref<48xi32, #tpu.memory_space<smem>>) -> (i32, i32) {
    %c0_i32 = arith.constant 0 : i32
    %c0_i32_0 = arith.constant 0 : i32
    %c0_i32_1 = arith.constant 0 : i32
    return %c0_i32, %c0_i32_0 : i32, i32
  }
  func.func @transform_2(%arg0: i32, %arg1: memref<48xi32, #tpu.memory_space<smem>>) -> (i32, i32) {
    %c0_i32 = arith.constant 0 : i32
    %c0_i32_0 = arith.constant 0 : i32
    %c0_i32_1 = arith.constant 0 : i32
    return %c0_i32, %c0_i32_0 : i32, i32
  }
  func.func @transform_3(%arg0: i32, %arg1: memref<48xi32, #tpu.memory_space<smem>>) -> (i32, i32) {
    %c0_i32 = arith.constant 0 : i32
    %c0_i32_0 = arith.constant 0 : i32
    %c0_i32_1 = arith.constant 0 : i32
    return %c0_i32, %c0_i32_0 : i32, i32
  }
  func.func @transform_4(%arg0: i32, %arg1: memref<48xi32, #tpu.memory_space<smem>>) -> (i32, i32) {
    %c0_i32 = arith.constant 0 : i32
    %c0_i32_0 = arith.constant 0 : i32
    %c0_i32_1 = arith.constant 0 : i32
    return %c0_i32, %c0_i32_0 : i32, i32
  }
  func.func @transform_5(%arg0: i32, %arg1: memref<48xi32, #tpu.memory_space<smem>>) -> (i32, i32) {
    %c0_i32 = arith.constant 0 : i32
    %c0_i32_0 = arith.constant 0 : i32
    return %arg0, %c0_i32 : i32, i32
  }
}

</mosaic_0001>

<llo_original>
// kernel: tpu_custom_call.1
$region0: #{tpu_custom_call.1}
  #allocation0 [shape = 'u32[]', space=smem, size = 0x4, offset = 0x4, fixed_abs, tag = 'smem constant byte address 0x4 - core index']
  #allocation1 [shape = 'u32[72,128]{1,0:T(1,128)}', space=vmem, size = 0x9000, scoped, tag = 'internal scratch']
  #allocation2 [shape = 'f32[24,256]{1,0:T(8,128)}', space=vmem, size = 0x6000, scoped, tag = 'scratch operand']
  #allocation3 [shape = 's32[1]{0}', space=sflag, size = 0x4, scoped, tag = 'scratch operand']
  #allocation4 [shape = 's32[1]{0}', space=sflag, size = 0x4, scoped, tag = 'scoped memory for tpu_custom_call.1']
  #allocation5 [shape = 'u8[512]{0}', space=smem, size = 0x200, scoped, tag = 'prefetched SMEM operand 0']
  #allocation12 [shape = 's32[]', space=sflag, size = 0x4, offset = 0, fixed_abs, tag = 'sflag constant byte address 0x0 - dummy sync flag']
  #allocation13 [shape = 's32[]', space=sflag, size = 0x4, offset = 0, fixed_abs, tag = 'sflag constant byte address 0x0 - dummy sync flag']
  #allocation14 [shape = 'u32[]', space=smem, size = 0x4, offset = 0x44, fixed_abs, tag = 'smem constant byte address 0x44 - assertion arg 0']
  #allocation15 [shape = 'u32[]', space=smem, size = 0x4, offset = 0x48, fixed_abs, tag = 'smem constant byte address 0x48 - assertion arg 1']
  #allocation16 [shape = 's32[]', space=sflag, size = 0x4, offset = 0, fixed_abs, tag = 'sflag constant byte address 0x0 - dummy sync flag']
  #allocation17 [shape = 's32[]', space=sflag, size = 0x4, offset = 0, fixed_abs, tag = 'sflag constant byte address 0x0 - dummy sync flag']
  %s0 = inlined_call_operand.hbm [shape: s32[48], index: 0, kind: input, shape index: {}]
  %s1 = inlined_call_operand.hbm [shape: f32[320,128], index: 1, kind: input, shape index: {}]
  %s2 = inlined_call_operand.hbm [shape: bf16[256,128], index: 2, kind: input, shape index: {}]
  %s3 = inlined_call_operand.vmem [shape: f32[1,128], index: 3, kind: input, shape index: {}]
  %s4 = inlined_call_operand.hbm [shape: bf16[128,128], index: 4, kind: input, shape index: {}]
  %s5 = inlined_call_operand.vmem [shape: f32[1,128], index: 5, kind: input, shape index: {}]
  %s6 = inlined_call_operand.hbm [shape: f32[24,128], index: 6, kind: output, shape index: {}]
  %s7 = sld [smem:[#allocation0]]
  $region56: #{tpu_custom_call.1} parent=0
    _
  %s9 = ssub.s32 1, %s7
  %s10 = scalar_select 0, %s9, %s7
  %s12 = sshll.u32 %s0, 4
  %s13 = int_to_ptr.hbm [resolvable:$true] %s12
  %15 = dma.hbm_to_smem %s13, 16, [#allocation5], [#allocation4]
  %17 = dma.done [#allocation4], 16
  %18 = sfence
  $region1: #{tpu_custom_call.1} parent=0
    #allocation6 [shape = 'u8[65536]{0}', space=vmem, size = 0x10000, scoped, tag = 'input window, operand 2, single buffered']
    #allocation7 [shape = 's32[1]{0}', space=sflag, size = 0x4, scoped, tag = 'scoped memory for tpu_custom_call.1']
    #allocation8 [shape = 's32[1]{0}', space=sflag, size = 0x4, scoped, tag = 'scoped memory for tpu_custom_call.1']
    #allocation9 [shape = 'u8[32768]{0}', space=vmem, size = 0x8000, scoped, tag = 'input window, operand 4, single buffered']
    #allocation10 [shape = 's32[1]{0}', space=sflag, size = 0x4, scoped, tag = 'scoped memory for tpu_custom_call.1']
    #allocation11 [shape = 'u8[12288]{0}', space=vmem, size = 0x3000, scoped, tag = 'output window, operand 0, single buffered']
    %19 = vsyncpa [#allocation7], 0
    %20 = vsyncpa [#allocation10], 0
    %21 = vsyncpa [#allocation8], 0
    // Predicated region
    $region2: #{tpu_custom_call.1} parent=1 // pred_check
      _
    $region3: #{tpu_custom_call.1} parent=1 // pred_check_branch
      %23 = sbr.rel (0) target = $region5
    $region4: #{tpu_custom_call.1} parent=1 // pred_region
      %25 = vsyncadd [#allocation7], 0
      %s26 = sshll.u32 %s2, 4
      %s27 = int_to_ptr.hbm [resolvable:$true] %s26
      %s28 = sshll.u32 [#allocation6], 4
      %s29 = int_to_ptr.vmem [resolvable:$true] %s28
      %34 = dma.hbm_to_vmem [thread:$0]  %s27, 2048, %s29, [#allocation7], 64, 64, 4
    $region5: #{tpu_custom_call.1} parent=1 // pred_fallthru
      _
    // Predicated region
    $region6: #{tpu_custom_call.1} parent=1 // pred_check
      _
    $region7: #{tpu_custom_call.1} parent=1 // pred_check_branch
      %36 = sbr.rel (0) target = $region9
    $region8: #{tpu_custom_call.1} parent=1 // pred_region
      _
    $region9: #{tpu_custom_call.1} parent=1 // pred_fallthru
      _
    // Predicated region
    $region10: #{tpu_custom_call.1} parent=1 // pred_check
      _
    $region11: #{tpu_custom_call.1} parent=1 // pred_check_branch
      %38 = sbr.rel (0) target = $region13
    $region12: #{tpu_custom_call.1} parent=1 // pred_region
      %40 = vsyncadd [#allocation10], 0
      %s41 = sshll.u32 %s4, 4
      %s42 = int_to_ptr.hbm [resolvable:$true] %s41
      %s43 = sshll.u32 [#allocation9], 4
      %s44 = int_to_ptr.vmem [resolvable:$true] %s43
      %49 = dma.hbm_to_vmem [thread:$0]  %s42, 1024, %s44, [#allocation10], 64, 64, 4
    $region13: #{tpu_custom_call.1} parent=1 // pred_fallthru
      _
    // Predicated region
    $region14: #{tpu_custom_call.1} parent=1 // pred_check
      _
    $region15: #{tpu_custom_call.1} parent=1 // pred_check_branch
      %51 = sbr.rel (0) target = $region17
    $region16: #{tpu_custom_call.1} parent=1 // pred_region
      _
    $region17: #{tpu_custom_call.1} parent=1 // pred_fallthru
      _
    // Predicated region
    $region18: #{tpu_custom_call.1} parent=1 // pred_check
      _
    $region19: #{tpu_custom_call.1} parent=1 // pred_check_branch
      %53 = sbr.rel (0) target = $region21
    $region20: #{tpu_custom_call.1} parent=1 // pred_region
      %55 = dma.done [#allocation7], 2048
    $region21: #{tpu_custom_call.1} parent=1 // pred_fallthru
      _
    // Predicated region
    $region22: #{tpu_custom_call.1} parent=1 // pred_check
      _
    $region23: #{tpu_custom_call.1} parent=1 // pred_check_branch
      %57 = sbr.rel (0) target = $region25
    $region24: #{tpu_custom_call.1} parent=1 // pred_region
      %59 = dma.done [#allocation10], 1024
    $region25: #{tpu_custom_call.1} parent=1 // pred_fallthru
      _
    %s60 = smul.u32 0, 48
    loop: start=0, step=1, limit=24
    $region26: #{tpu_custom_call.1} parent=1 // loop_pre_header
      _
    $region27: #{tpu_custom_call.1} parent=1 // loop_header
      %s62 = sphi 0, %s66
      %p63 = scmp.ge.s32.totalorder %s62, 24
    $region28: #{tpu_custom_call.1} parent=1 // loop_header_branch
      %65 = sbr.rel (%p63) target = $region32
    $region29: #{tpu_custom_call.1} parent=1 // loop_body
      %s67 = smul.u32 %s62, 2
      %s68 = sadd.s32 %s60, %s67
      %s69 = sld [smem:[#allocation5 + %s68]]
      %s70 = sadd.s32 %s68, 1
      %s71 = sld [smem:[#allocation5 + %s70]]
      %s72 = scalar_lea.hbm %s1, %s69
      %s73 = sshrl.u32 %s62, 3
      %s74 = sand.u32 %s62, 7
      %s75 = smul.u32 %s73, 16
      %s76 = sadd.s32 %s74, %s75
      %s77 = scalar_lea.vmem [#allocation2], %s76
      // Predicated region
      $region33: #{tpu_custom_call.1} parent=29 // pred_check
        _
      $region34: #{tpu_custom_call.1} parent=29 // pred_check_branch
        %79 = sbr.rel target = $region36
      $region35: #{tpu_custom_call.1} parent=29 // pred_region
        %80 = sst [smem:[#allocation14]] [#allocation13]
        %81 = sst [smem:[#allocation15]] [#allocation12]
      $region36: #{tpu_custom_call.1} parent=29 // pred_fallthru
        _
      %83 = shalt.err (0)
      %s85 = sshll.u32 %s72, 4
      %s86 = int_to_ptr.hbm [resolvable:$true] %s85
      %s87 = sshll.u32 %s77, 4
      %s88 = int_to_ptr.vmem [resolvable:$true] %s87
      %90 = dma.hbm_to_vmem [thread:$0]  %s86, 16, %s88, [#allocation3]
      %s91 = scalar_lea.hbm %s1, %s71
      %s92 = sadd.s32 8, %s76
      %s93 = scalar_lea.vmem [#allocation2], %s92
      // Predicated region
      $region37: #{tpu_custom_call.1} parent=29 // pred_check
        _
      $region38: #{tpu_custom_call.1} parent=29 // pred_check_branch
        %95 = sbr.rel target = $region40
      $region39: #{tpu_custom_call.1} parent=29 // pred_region
        %96 = sst [smem:[#allocation14]] [#allocation17]
        %97 = sst [smem:[#allocation15]] [#allocation16]
      $region40: #{tpu_custom_call.1} parent=29 // pred_fallthru
        _
      %99 = shalt.err (0)
      %s101 = sshll.u32 %s91, 4
      %s102 = int_to_ptr.hbm [resolvable:$true] %s101
      %s103 = sshll.u32 %s93, 4
      %s104 = int_to_ptr.vmem [resolvable:$true] %s103
      %106 = dma.hbm_to_vmem [thread:$0]  %s102, 16, %s104, [#allocation3]
    $region30: #{tpu_custom_call.1} parent=1 // loop_footer
      %s66 = sadd.s32 1, %s62
    $region31: #{tpu_custom_call.1} parent=1 // loop_footer_branch
      %61 = sbr.rel target = $region27
    $region32: #{tpu_custom_call.1} parent=1 // loop_exit
      _
    loop: start=0, step=1, limit=48
    $region41: #{tpu_custom_call.1} parent=1 // loop_pre_header
      _
    $region42: #{tpu_custom_call.1} parent=1 // loop_header
      %s108 = sphi 0, %s112
      %p109 = scmp.ge.s32.totalorder %s108, 48
    $region43: #{tpu_custom_call.1} parent=1 // loop_header_branch
      %111 = sbr.rel (%p109) target = $region47
    $region44: #{tpu_custom_call.1} parent=1 // loop_body
      %s113 = smul.u32 1, 1
      %s114 = sshll.u32 %s113, 4
      %115 = dma.done [#allocation3], %s114
    $region45: #{tpu_custom_call.1} parent=1 // loop_footer
      %s112 = sadd.s32 1, %s108
    $region46: #{tpu_custom_call.1} parent=1 // loop_footer_branch
      %107 = sbr.rel target = $region42
    $region47: #{tpu_custom_call.1} parent=1 // loop_exit
      _
    %v116 = vld [vmem:[#allocation2] sm:$0xff]
    %v117 = vld [vmem:[#allocation2 + $0x8] sm:$0xff]
    %v118 = vld [vmem:[#allocation2 + $0x10] sm:$0xff]
    %v119 = vld [vmem:[#allocation2 + $0x18] sm:$0xff]
    %v120 = vld [vmem:[#allocation2 + $0x20] sm:$0xff]
    %v121 = vld [vmem:[#allocation2 + $0x28] sm:$0xff]
    %v122 = vpack.c.bf16 %v118, %v116
    %v123 = vpack.c.bf16 %v119, %v117
    %v124 = vpack.c.bf16 %v120, %v120
    %v125 = vpack.c.bf16 %v121, %v121
    %v126 = vld [vmem:[#allocation6] sm:$0xf]
    %v127 = vld [vmem:[#allocation6 + $0x4] sm:$0xf]
    %v128 = vld [vmem:[#allocation6 + $0x8] sm:$0xf]
    %v129 = vld [vmem:[#allocation6 + $0xc] sm:$0xf]
    %v130 = vld [vmem:[#allocation6 + $0x10] sm:$0xf]
    %v131 = vld [vmem:[#allocation6 + $0x14] sm:$0xf]
    %v132 = vld [vmem:[#allocation6 + $0x18] sm:$0xf]
    %v133 = vld [vmem:[#allocation6 + $0x1c] sm:$0xf]
    %v134 = vld [vmem:[#allocation6 + $0x20] sm:$0xf]
    %v135 = vld [vmem:[#allocation6 + $0x24] sm:$0xf]
    %v136 = vld [vmem:[#allocation6 + $0x28] sm:$0xf]
    %v137 = vld [vmem:[#allocation6 + $0x2c] sm:$0xf]
    %v138 = vld [vmem:[#allocation6 + $0x30] sm:$0xf]
    %v139 = vld [vmem:[#allocation6 + $0x34] sm:$0xf]
    %v140 = vld [vmem:[#allocation6 + $0x38] sm:$0xf]
    %v141 = vld [vmem:[#allocation6 + $0x3c] sm:$0xf]
    %v142 = vld [vmem:[#allocation6 + $0x40] sm:$0xf]
    %v143 = vld [vmem:[#allocation6 + $0x44] sm:$0xf]
    %v144 = vld [vmem:[#allocation6 + $0x48] sm:$0xf]
    %v145 = vld [vmem:[#allocation6 + $0x4c] sm:$0xf]
    %v146 = vld [vmem:[#allocation6 + $0x50] sm:$0xf]
    %v147 = vld [vmem:[#allocation6 + $0x54] sm:$0xf]
    %v148 = vld [vmem:[#allocation6 + $0x58] sm:$0xf]
    %v149 = vld [vmem:[#allocation6 + $0x5c] sm:$0xf]
    %v150 = vld [vmem:[#allocation6 + $0x60] sm:$0xf]
    %v151 = vld [vmem:[#allocation6 + $0x64] sm:$0xf]
    %v152 = vld [vmem:[#allocation6 + $0x68] sm:$0xf]
    %v153 = vld [vmem:[#allocation6 + $0x6c] sm:$0xf]
    %v154 = vld [vmem:[#allocation6 + $0x70] sm:$0xf]
    %v155 = vld [vmem:[#allocation6 + $0x74] sm:$0xf]
    %v156 = vld [vmem:[#allocation6 + $0x78] sm:$0xf]
    %v157 = vld [vmem:[#allocation6 + $0x7c] sm:$0xf]
    %v158 = vld [vmem:[%s3] sm:$0x1]
    %v160 = vperm.slane %v158, 0
    %v194 = vunpack.c.l.b16 %v126
    %v195 = vunpack.c.l.b16 %v127
    %v196 = vunpack.c.l.b16 %v128
    %v197 = vunpack.c.l.b16 %v129
    %v198 = vunpack.c.l.b16 %v130
    %v199 = vunpack.c.l.b16 %v131
    %v200 = vunpack.c.l.b16 %v132
    %v201 = vunpack.c.l.b16 %v133
    %v202 = vunpack.c.l.b16 %v134
    %v203 = vunpack.c.l.b16 %v135
    %v204 = vunpack.c.l.b16 %v136
    %v205 = vunpack.c.l.b16 %v137
    %v206 = vunpack.c.l.b16 %v138
    %v207 = vunpack.c.l.b16 %v139
    %v208 = vunpack.c.l.b16 %v140
    %v209 = vunpack.c.l.b16 %v141
    %v210 = vunpack.c.l.b16 %v142
    %v211 = vunpack.c.l.b16 %v143
    %v212 = vunpack.c.l.b16 %v144
    %v213 = vunpack.c.l.b16 %v145
    %v214 = vunpack.c.l.b16 %v146
    %v215 = vunpack.c.l.b16 %v147
    %v216 = vunpack.c.l.b16 %v148
    %v217 = vunpack.c.l.b16 %v149
    %v218 = vunpack.c.l.b16 %v150
    %v219 = vunpack.c.l.b16 %v151
    %v220 = vunpack.c.l.b16 %v152
    %v221 = vunpack.c.l.b16 %v153
    %v222 = vunpack.c.l.b16 %v154
    %v223 = vunpack.c.l.b16 %v155
    %v224 = vunpack.c.l.b16 %v156
    %v225 = vunpack.c.l.b16 %v157
    %v226 = vpack.c.b16 %v195, %v194
    %v227 = vpack.c.b16 %v197, %v196
    %v228 = vpack.c.b16 %v199, %v198
    %v229 = vpack.c.b16 %v201, %v200
    %v230 = vpack.c.b16 %v203, %v202
    %v231 = vpack.c.b16 %v205, %v204
    %v232 = vpack.c.b16 %v207, %v206
    %v233 = vpack.c.b16 %v209, %v208
    %v234 = vpack.c.b16 %v211, %v210
    %v235 = vpack.c.b16 %v213, %v212
    %v236 = vpack.c.b16 %v215, %v214
    %v237 = vpack.c.b16 %v217, %v216
    %v238 = vpack.c.b16 %v219, %v218
    %v239 = vpack.c.b16 %v221, %v220
    %v240 = vpack.c.b16 %v223, %v222
    %v241 = vpack.c.b16 %v225, %v224
    %258 = vmatpush.bf16.msra.mxu0 %v233
    %259 = vmatpush.bf16.msra.mxu0 %v232
    %260 = vmatpush.bf16.msra.mxu0 %v231
    %261 = vmatpush.bf16.msra.mxu0 %v230
    %262 = vmatpush.bf16.msra.mxu0 %v229
    %263 = vmatpush.bf16.msra.mxu0 %v228
    %264 = vmatpush.bf16.msra.mxu0 %v227
    %265 = vmatpush.bf16.msra.mxu0 %v226
    %266 = vmatmul.bf16.gmra.mxu0 %v122
    %v267 = vpop.f32.mrf.mxu0
    %v268 = vadd.f32 %v160, %v267
    %v269 = vpop.f32.mrf.mxu0
    %v270 = vadd.f32 %v160, %v269
    %271 = vmatmul.bf16.gmra.mxu0 %v124
    %v272 = vpop.f32.mrf.mxu0
    %v273 = vadd.f32 %v160, %v272
    %v274 = vpop.f32.mrf.mxu0
    %275 = vdwg.mxu0
    %276 = vmatpush.bf16.msra.mxu0 %v241
    %277 = vmatpush.bf16.msra.mxu0 %v240
    %278 = vmatpush.bf16.msra.mxu0 %v239
    %279 = vmatpush.bf16.msra.mxu0 %v238
    %280 = vmatpush.bf16.msra.mxu0 %v237
    %281 = vmatpush.bf16.msra.mxu0 %v236
    %282 = vmatpush.bf16.msra.mxu0 %v235
    %283 = vmatpush.bf16.msra.mxu0 %v234
    %284 = vmatmul.bf16.gmra.mxu0 %v123
    %v285 = vpop.f32.mrf.mxu0
    %v286 = vadd.f32 %v268, %v285
    %v287 = vpop.f32.mrf.mxu0
    %v288 = vadd.f32 %v270, %v287
    %289 = vmatmul.bf16.gmra.mxu0 %v125
    %v290 = vpop.f32.mrf.mxu0
    %v291 = vadd.f32 %v273, %v290
    %v292 = vpop.f32.mrf.mxu0
    %293 = vdwg.mxu0
    %v294 = vtanh.pop %v286
    %v295 = vtanh.pop %v288
    %v296 = vtanh.pop %v291
    %v297 = vpack.c.bf16 %v295, %v294
    %v298 = vpack.c.bf16 %v296, %v296
    %v299 = vld [vmem:[#allocation9] sm:$0xf]
    %v300 = vld [vmem:[#allocation9 + $0x4] sm:$0xf]
    %v301 = vld [vmem:[#allocation9 + $0x8] sm:$0xf]
    %v302 = vld [vmem:[#allocation9 + $0xc] sm:$0xf]
    %v303 = vld [vmem:[#allocation9 + $0x10] sm:$0xf]
    %v304 = vld [vmem:[#allocation9 + $0x14] sm:$0xf]
    %v305 = vld [vmem:[#allocation9 + $0x18] sm:$0xf]
    %v306 = vld [vmem:[#allocation9 + $0x1c] sm:$0xf]
    %v307 = vld [vmem:[#allocation9 + $0x20] sm:$0xf]
    %v308 = vld [vmem:[#allocation9 + $0x24] sm:$0xf]
    %v309 = vld [vmem:[#allocation9 + $0x28] sm:$0xf]
    %v310 = vld [vmem:[#allocation9 + $0x2c] sm:$0xf]
    %v311 = vld [vmem:[#allocation9 + $0x30] sm:$0xf]
    %v312 = vld [vmem:[#allocation9 + $0x34] sm:$0xf]
    %v313 = vld [vmem:[#allocation9 + $0x38] sm:$0xf]
    %v314 = vld [vmem:[#allocation9 + $0x3c] sm:$0xf]
    %v315 = vld [vmem:[%s5] sm:$0x1]
    %v317 = vperm.slane %v315, 0
    %v335 = vunpack.c.l.b16 %v299
    %v336 = vunpack.c.l.b16 %v300
    %v337 = vunpack.c.l.b16 %v301
    %v338 = vunpack.c.l.b16 %v302
    %v339 = vunpack.c.l.b16 %v303
    %v340 = vunpack.c.l.b16 %v304
    %v341 = vunpack.c.l.b16 %v305
    %v342 = vunpack.c.l.b16 %v306
    %v343 = vunpack.c.l.b16 %v307
    %v344 = vunpack.c.l.b16 %v308
    %v345 = vunpack.c.l.b16 %v309
    %v346 = vunpack.c.l.b16 %v310
    %v347 = vunpack.c.l.b16 %v311
    %v348 = vunpack.c.l.b16 %v312
    %v349 = vunpack.c.l.b16 %v313
    %v350 = vunpack.c.l.b16 %v314
    %v351 = vpack.c.b16 %v336, %v335
    %v352 = vpack.c.b16 %v338, %v337
    %v353 = vpack.c.b16 %v340, %v339
    %v354 = vpack.c.b16 %v342, %v341
    %v355 = vpack.c.b16 %v344, %v343
    %v356 = vpack.c.b16 %v346, %v345
    %v357 = vpack.c.b16 %v348, %v347
    %v358 = vpack.c.b16 %v350, %v349
    %367 = vmatpush.bf16.msra.mxu0 %v358
    %368 = vmatpush.bf16.msra.mxu0 %v357
    %369 = vmatpush.bf16.msra.mxu0 %v356
    %370 = vmatpush.bf16.msra.mxu0 %v355
    %371 = vmatpush.bf16.msra.mxu0 %v354
    %372 = vmatpush.bf16.msra.mxu0 %v353
    %373 = vmatpush.bf16.msra.mxu0 %v352
    %374 = vmatpush.bf16.msra.mxu0 %v351
    %375 = vmatmul.bf16.gmra.mxu0 %v297
    %v376 = vpop.f32.mrf.mxu0
    %v377 = vadd.f32 %v317, %v376
    %v378 = vpop.f32.mrf.mxu0
    %v379 = vadd.f32 %v317, %v378
    %380 = vmatmul.bf16.gmra.mxu0 %v298
    %v381 = vpop.f32.mrf.mxu0
    %v382 = vadd.f32 %v317, %v381
    %v383 = vpop.f32.mrf.mxu0
    %384 = vdwg.mxu0
    %v385 = vlaneseq
    %v386 = vand.u32 %v385, 127
    %vm387 = vcmp.lt.s32.totalorder %v386, 2
    %v388 = vsel %vm387, %v377, -1e+30
    %v389 = vsel %vm387, %v379, -1e+30
    %v390 = vsel %vm387, %v382, -1e+30
    %391 = vmax.xlane.f32.xlu0 %v388
    %v392 = vpop.xlane.xlu0 %391
    %393 = vmax.xlane.f32.xlu0 %v389
    %v394 = vpop.xlane.xlu0 %393
    %395 = vmax.xlane.f32.xlu0 %v390
    %v396 = vpop.xlane.xlu0 %395
    %v397 = vsub.f32 %v388, %v392
    %v398 = vsub.f32 %v389, %v394
    %v399 = vsub.f32 %v390, %v396
    %v400 = vmul.f32 %v397, 1.442695
    %v401 = vpow.pop %v400
    %v402 = vmul.f32 %v398, 1.442695
    %v403 = vpow.pop %v402
    %v404 = vmul.f32 %v399, 1.442695
    %v405 = vpow.pop %v404
    %406 = vadd.xlane.f32.xlu0 %v401
    %v407 = vpop.xlane.xlu0 %406
    %408 = vadd.xlane.f32.xlu0 %v403
    %v409 = vpop.xlane.xlu0 %408
    %410 = vadd.xlane.f32.xlu0 %v405
    %v411 = vpop.xlane.xlu0 %410
    %v412 = vrcp.pop %v407
    %v413 = vrcp.pop %v409
    %v414 = vrcp.pop %v411
    %v415 = vmul.f32 %v401, %v412
    %v416 = vmul.f32 %v403, %v413
    %v417 = vmul.f32 %v405, %v414
    %v418 = vlog2.pop %v407
    %v419 = vmul.f32 %v418, 0.6931472
    %v420 = vlog2.pop %v409
    %v421 = vmul.f32 %v420, 0.6931472
    %v422 = vlog2.pop %v411
    %v423 = vmul.f32 %v422, 0.6931472
    %v424 = vsub.f32 %v397, %v419
    %v425 = vsub.f32 %v398, %v421
    %v426 = vsub.f32 %v399, %v423
    %vm427 = vcmp.eq.s32.totalorder %v386, 0
    %v428 = vsel %vm427, %v424, 0.0
    %v429 = vsel %vm427, %v425, 0.0
    %v430 = vsel %vm427, %v426, 0.0
    %431 = vadd.xlane.f32.xlu0 %v428
    %v432 = vpop.xlane.xlu0 %431
    %433 = vadd.xlane.f32.xlu0 %v429
    %v434 = vpop.xlane.xlu0 %433
    %435 = vadd.xlane.f32.xlu0 %v430
    %v436 = vpop.xlane.xlu0 %435
    %vm437 = vcmp.eq.s32.totalorder %v386, 1
    %v438 = vsel %vm437, %v424, 0.0
    %v439 = vsel %vm437, %v425, 0.0
    %v440 = vsel %vm437, %v426, 0.0
    %441 = vadd.xlane.f32.xlu0 %v438
    %v442 = vpop.xlane.xlu0 %441
    %443 = vadd.xlane.f32.xlu0 %v439
    %v444 = vpop.xlane.xlu0 %443
    %445 = vadd.xlane.f32.xlu0 %v440
    %v446 = vpop.xlane.xlu0 %445
    %vm447 = vcmp.eq.s32.totalorder %v386, 2
    %vm448 = vcmp.eq.s32.totalorder %v386, 3
    %v449 = vsel %vm448, %v442, 0.0
    %v450 = vsel %vm448, %v444, 0.0
    %v451 = vsel %vm448, %v446, 0.0
    %v452 = vsel %vm447, %v432, %v449
    %v453 = vsel %vm447, %v434, %v450
    %v454 = vsel %vm447, %v436, %v451
    %v455 = vsel %vm387, %v415, %v452
    %v456 = vsel %vm387, %v416, %v453
    %v457 = vsel %vm387, %v417, %v454
    %458 = vst [vmem:[#allocation11] sm:$0xff] %v455
    %459 = vst [vmem:[#allocation11 + $0x8] sm:$0xff] %v456
    %460 = vst [vmem:[#allocation11 + $0x10] sm:$0xff] %v457
    // Predicated region
    $region48: #{tpu_custom_call.1} parent=1 // pred_check
      _
    $region49: #{tpu_custom_call.1} parent=1 // pred_check_branch
      %462 = sbr.rel (0) target = $region51
    $region50: #{tpu_custom_call.1} parent=1 // pred_region
      %464 = vsyncadd [#allocation8], 0
      %s465 = sshll.u32 [#allocation11], 4
      %s466 = int_to_ptr.vmem [resolvable:$true] %s465
      %s467 = sshll.u32 %s6, 4
      %s468 = int_to_ptr.hbm [resolvable:$true] %s467
      %473 = dma.vmem_to_hbm [thread:$0]  %s466, 384, %s468, [#allocation8], 128, 128, 8
    $region51: #{tpu_custom_call.1} parent=1 // pred_fallthru
      _
    // Predicated region
    $region52: #{tpu_custom_call.1} parent=1 // pred_check
      _
    $region53: #{tpu_custom_call.1} parent=1 // pred_check_branch
      %475 = sbr.rel (0) target = $region55
    $region54: #{tpu_custom_call.1} parent=1 // pred_region
      %477 = dma.done [#allocation8], 384
    $region55: #{tpu_custom_call.1} parent=1 // pred_fallthru
      _
    %478 = vsyncpa [#allocation7], 1
    %479 = vsyncpa [#allocation10], 1
    %480 = vsyncpa [#allocation8], 1
  %481 = vsyncmov [#allocation3]
  %s482 = vpop.sfrf %481
  %p483 = scmp.eq.s32.totalorder %s482, 0
  %p484 = pneg %p483
  %486 = shalt.err (%p484)

</llo_original>
